<compile_context>
chip_gen: v7x
topology: tpu7x:2x2x1
jax: 0.10.0
libtpu: 0.0.40
codegen_flags: <defaults>
</compile_context>

<pallas_src>
from functools import partial

import jax
import jax.numpy as jnp
from jax.experimental import pallas as pl
from jax.experimental.pallas import tpu as pltpu

KSIZE = 7
PAD = (KSIZE - 1) // 2
BN_EPS = 1e-5


def _cbam_kernel(x_ref, w1_ref, b1_ref, w2_ref, b2_ref, s_ref, bnp_ref, out_ref):
    x = x_ref[...]                                   # (N, C, HW) f32, lane-dense
    N, C, HW = x.shape

    # ---------------- Channel attention ----------------
    # avg & max are lane reductions over the same loaded x vregs (single stream).
    avg = jnp.mean(x, axis=-1)                       # (N, C)
    mx = jnp.max(x, axis=-1)                         # (N, C)

    # Fused shared MLP: one pass over the stacked (2N, C) pooled features.
    pooled = jnp.concatenate([avg, mx], axis=0)      # (2N, C)
    h = jnp.dot(pooled, w1_ref[...], preferred_element_type=jnp.float32) + b1_ref[...]
    h = jnp.maximum(h, 0.0)                          # ReLU
    y = jnp.dot(h, w2_ref[...], preferred_element_type=jnp.float32) + b2_ref[...]
    gate = jax.nn.sigmoid(y[:N] + y[N:])             # (N, C)

    # Kept live and reused for the final write (saves one N*C*HW multiply + x re-read).
    x_ca = x * gate[:, :, None]                      # (N, C, HW)

    # ---------------- Spatial attention ----------------
    cmax = jnp.max(x_ca, axis=1)                     # (N, HW) sublane reduction
    cmean = jnp.mean(x_ca, axis=1)                   # (N, HW)

    # 7x7 conv (2 in-channels -> 1 out-channel, zero padding, no bias) as a single
    # MXU matmul against the precomputed stencil matrix (zero rows encode padding).
    stacked = jnp.concatenate([cmax, cmean], axis=1)               # (N, 2*HW)
    conv = jnp.dot(stacked, s_ref[...],
                   preferred_element_type=jnp.float32)             # (N, HW)

    # BatchNorm2d(1) with batch statistics (training mode, biased variance).
    mu = jnp.mean(conv)
    var = jnp.mean((conv - mu) ** 2)
    gamma = bnp_ref[0]
    beta = bnp_ref[1]
    bn = (conv - mu) * jax.lax.rsqrt(var + BN_EPS) * gamma + beta
    scale = jax.nn.sigmoid(bn)                        # (N, HW)

    # Final write reuses x_ca: out = x_ca * spatial_scale.
    out_ref[...] = x_ca * scale[:, None, :]


def _build_stencil(wconv, H, W):
    """Build the (2*HW, HW) conv stencil matrix from the (2, 7, 7) conv weights.

    S[ch*HW + q, p] = w[ch, r_q - r_p + PAD, c_q - c_p + PAD] when (q - p) falls
    inside the 7x7 window, else 0.  Zero-padding of the conv is implicit because
    out-of-bounds source positions simply have no row in S.
    """
    HW = H * W
    wk = wconv.reshape(2, KSIZE, KSIZE)
    p = jnp.arange(HW)
    r = p // W
    c = p % W
    dr = r[:, None] - r[None, :] + PAD               # (q, p)
    dc = c[:, None] - c[None, :] + PAD
    in_win = (dr >= 0) & (dr < KSIZE) & (dc >= 0) & (dc < KSIZE)
    dr_c = jnp.clip(dr, 0, KSIZE - 1)
    dc_c = jnp.clip(dc, 0, KSIZE - 1)
    S = jnp.where(in_win[None], wk[:, dr_c, dc_c], 0.0)   # (2, HW, HW)
    return S.reshape(2 * HW, HW).astype(jnp.float32)


def cbam_forward(x, w1, b1, w2, b2, wconv, bnp):
    N, C, H, W = x.shape
    HW = H * W
    Cr = w1.shape[1]

    x_flat = x.reshape(N, C, HW)            # lane-dense trailing dim (multiple of 128)
    stencil = _build_stencil(wconv, H, W)   # (2*HW, HW), ~512 KiB at HW=256

    vmem = lambda: pl.BlockSpec(memory_space=pltpu.MemorySpace.VMEM)
    smem = lambda: pl.BlockSpec(memory_space=pltpu.MemorySpace.SMEM)

    flops = (2 * N * (2 * HW) * HW          # stencil matmul (conv)
             + 8 * N * C * Cr               # shared MLP (both branches)
             + 6 * N * C * HW)              # pools, gate multiply, final multiply
    transcendentals = N * C + N * HW        # sigmoids
    bytes_accessed = 4 * (2 * N * C * HW + 2 * HW * HW + 2 * C * Cr + C + Cr + 2)

    out_flat = pl.pallas_call(
        _cbam_kernel,
        out_shape=jax.ShapeDtypeStruct((N, C, HW), jnp.float32),
        in_specs=[vmem(), vmem(), vmem(), vmem(), vmem(), vmem(), smem()],
        out_specs=vmem(),
        compiler_params=pltpu.CompilerParams(vmem_limit_bytes=32 * 1024 * 1024),
        cost_estimate=pl.CostEstimate(flops=flops,
                                      transcendentals=transcendentals,
                                      bytes_accessed=bytes_accessed),
    )(x_flat, w1, b1, w2, b2, stencil, bnp)
    return out_flat.reshape(N, C, H, W)


def cbam_reference(x, w1, b1, w2, b2, wconv, bnp):
    """Pure-JAX reference of the PyTorch forward pass."""
    avg = jnp.mean(x, axis=(2, 3))
    mx = jnp.max(x, axis=(2, 3))

    def mlp(v):
        return jnp.maximum(v @ w1 + b1, 0.0) @ w2 + b2

    gate = jax.nn.sigmoid(mlp(avg) + mlp(mx))
    x_ca = x * gate[:, :, None, None]

    comp = jnp.stack([jnp.max(x_ca, axis=1), jnp.mean(x_ca, axis=1)], axis=1)  # (N,2,H,W)
    wk = wconv.reshape(1, 2, KSIZE, KSIZE)
    conv = jax.lax.conv_general_dilated(
        comp, wk, window_strides=(1, 1), padding=[(PAD, PAD), (PAD, PAD)],
        dimension_numbers=("NCHW", "OIHW", "NCHW"))                             # (N,1,H,W)
    mu = jnp.mean(conv)
    var = jnp.mean((conv - mu) ** 2)
    bn = (conv - mu) * jax.lax.rsqrt(var + BN_EPS) * bnp[0] + bnp[1]
    return x_ca * jax.nn.sigmoid(bn)


if __name__ == "__main__":
    N, C, H, W = 2, 32, 16, 16          # channel_in=32, reduction_ratio=16 -> hidden=2
    reduction = 16
    Cr = C // reduction

    key = jax.random.PRNGKey(0)
    ks = jax.random.split(key, 6)
    x = jax.random.normal(ks[0], (N, C, H, W), jnp.float32)

    # Deterministic synthetic parameters (shapes from the module's __init__).
    w1 = jax.random.normal(ks[1], (C, Cr), jnp.float32) * 0.2    # Linear(C -> C/r), x @ w1
    b1 = jax.random.normal(ks[2], (1, Cr), jnp.float32) * 0.1
    w2 = jax.random.normal(ks[3], (Cr, C), jnp.float32) * 0.2    # Linear(C/r -> C)
    b2 = jax.random.normal(ks[4], (1, C), jnp.float32) * 0.1
    wconv = jax.random.normal(ks[5], (2, KSIZE * KSIZE), jnp.float32) * 0.1  # Conv2d(2->1,7x7) flat
    bnp = jnp.array([1.0, 0.0], jnp.float32)                     # BN gamma, beta (PyTorch defaults)

    out = jax.block_until_ready(cbam_forward(x, w1, b1, w2, b2, wconv, bnp))
    ref = cbam_reference(x, w1, b1, w2, b2, wconv, bnp)

    assert out.shape == (N, C, H, W)
    max_err = float(jnp.max(jnp.abs(out - ref)))
    assert jnp.allclose(out, ref, rtol=1e-3, atol=1e-3), f"max abs err = {max_err}"
    print("KERNEL_OK")
</pallas_src>

<mosaic_0001>
module attributes {stable_mosaic.version = 11 : i64} {
  func.func @_cbam_kernel(%arg0: memref<2x32x256xf32, #tpu.memory_space<vmem>>, %arg1: memref<32x2xf32, #tpu.memory_space<vmem>>, %arg2: memref<1x2xf32, #tpu.memory_space<vmem>>, %arg3: memref<2x32xf32, #tpu.memory_space<vmem>>, %arg4: memref<1x32xf32, #tpu.memory_space<vmem>>, %arg5: memref<512x256xf32, #tpu.memory_space<vmem>>, %arg6: memref<2xf32, #tpu.memory_space<smem>>, %arg7: memref<2x32x256xf32, #tpu.memory_space<vmem>>) attributes {dimension_semantics = [], scalar_prefetch = 0 : i64, scratch_operands = 0 : i64, tpu.core_type = #tpu.core_type<tc>} {
    %c0 = arith.constant 0 : index
    %c0_0 = arith.constant 0 : index
    %c0_1 = arith.constant 0 : index
    %0 = vector.load %arg0[%c0, %c0_0, %c0_1] : memref<2x32x256xf32, #tpu.memory_space<vmem>>, vector<2x32x256xf32>
    %cst = arith.constant dense<0.000000e+00> : vector<2x32xf32>
    %1 = vector.multi_reduction <add>, %0, %cst [2] : vector<2x32x256xf32> to vector<2x32xf32>
    %cst_2 = arith.constant 2.560000e+02 : f32
    %2 = vector.broadcast %cst_2 : f32 to vector<2x32xf32>
    %3 = arith.divf %1, %2 : vector<2x32xf32>
    %cst_3 = arith.constant dense<0xFF800000> : vector<2x32xf32>
    %4 = vector.multi_reduction <maximumf>, %0, %cst_3 [2] : vector<2x32x256xf32> to vector<2x32xf32>
    %5 = tpu.concatenate %3, %4 in 0 : vector<2x32xf32>, vector<2x32xf32> -> vector<4x32xf32>
    %c0_4 = arith.constant 0 : index
    %c0_5 = arith.constant 0 : index
    %6 = vector.load %arg1[%c0_4, %c0_5] : memref<32x2xf32, #tpu.memory_space<vmem>>, vector<32x2xf32>
    %cst_6 = arith.constant dense<0.000000e+00> : vector<4x2xf32>
    %7 = tpu.matmul %5, %6, %cst_6 {dimension_numbers = #tpu.dot_dimension_numbers<[1], [0], [0], [1], [0, 0, 1, 1], [], []>} : vector<4x32xf32>, vector<32x2xf32>, vector<4x2xf32> -> vector<4x2xf32>
    %c0_7 = arith.constant 0 : index
    %c0_8 = arith.constant 0 : index
    %8 = vector.load %arg2[%c0_7, %c0_8] : memref<1x2xf32, #tpu.memory_space<vmem>>, vector<1x2xf32>
    %9 = vector.broadcast %8 : vector<1x2xf32> to vector<4x2xf32>
    %10 = arith.addf %7, %9 : vector<4x2xf32>
    %cst_9 = arith.constant 0.000000e+00 : f32
    %11 = vector.broadcast %cst_9 : f32 to vector<4x2xf32>
    %12 = arith.maximumf %10, %11 : vector<4x2xf32>
    %c0_10 = arith.constant 0 : index
    %c0_11 = arith.constant 0 : index
    %13 = vector.load %arg3[%c0_10, %c0_11] : memref<2x32xf32, #tpu.memory_space<vmem>>, vector<2x32xf32>
    %cst_12 = arith.constant dense<0.000000e+00> : vector<4x32xf32>
    %14 = tpu.matmul %12, %13, %cst_12 {dimension_numbers = #tpu.dot_dimension_numbers<[1], [0], [0], [1], [0, 0, 1, 1], [], []>} : vector<4x2xf32>, vector<2x32xf32>, vector<4x32xf32> -> vector<4x32xf32>
    %c0_13 = arith.constant 0 : index
    %c0_14 = arith.constant 0 : index
    %15 = vector.load %arg4[%c0_13, %c0_14] : memref<1x32xf32, #tpu.memory_space<vmem>>, vector<1x32xf32>
    %16 = vector.broadcast %15 : vector<1x32xf32> to vector<4x32xf32>
    %17 = arith.addf %14, %16 : vector<4x32xf32>
    %18 = vector.extract_strided_slice %17 {offsets = [0, 0], sizes = [2, 32], strides = [1, 1]} : vector<4x32xf32> to vector<2x32xf32>
    %19 = vector.extract_strided_slice %17 {offsets = [2, 0], sizes = [2, 32], strides = [1, 1]} : vector<4x32xf32> to vector<2x32xf32>
    %20 = arith.addf %18, %19 : vector<2x32xf32>
    %21 = arith.negf %20 : vector<2x32xf32>
    %22 = math.exp %21 : vector<2x32xf32>
    %cst_15 = arith.constant 1.000000e+00 : f32
    %23 = vector.broadcast %cst_15 : f32 to vector<2x32xf32>
    %24 = arith.addf %23, %22 : vector<2x32xf32>
    %25 = arith.divf %23, %24 : vector<2x32xf32>
    %26 = vector.shape_cast %25 : vector<2x32xf32> to vector<2x32x1xf32>
    %27 = vector.broadcast %26 : vector<2x32x1xf32> to vector<2x32x256xf32>
    %28 = arith.mulf %0, %27 : vector<2x32x256xf32>
    %cst_16 = arith.constant dense<0xFF800000> : vector<2x256xf32>
    %29 = vector.multi_reduction <maximumf>, %28, %cst_16 [1] : vector<2x32x256xf32> to vector<2x256xf32>
    %cst_17 = arith.constant dense<0.000000e+00> : vector<2x256xf32>
    %30 = vector.multi_reduction <add>, %28, %cst_17 [1] : vector<2x32x256xf32> to vector<2x256xf32>
    %cst_18 = arith.constant 3.200000e+01 : f32
    %31 = vector.broadcast %cst_18 : f32 to vector<2x256xf32>
    %32 = arith.divf %30, %31 : vector<2x256xf32>
    %33 = tpu.concatenate %29, %32 in 1 : vector<2x256xf32>, vector<2x256xf32> -> vector<2x512xf32>
    %c0_19 = arith.constant 0 : index
    %c0_20 = arith.constant 0 : index
    %34 = vector.load %arg5[%c0_19, %c0_20] : memref<512x256xf32, #tpu.memory_space<vmem>>, vector<512x256xf32>
    %cst_21 = arith.constant dense<0.000000e+00> : vector<2x256xf32>
    %35 = tpu.matmul %33, %34, %cst_21 {dimension_numbers = #tpu.dot_dimension_numbers<[1], [0], [0], [1], [0, 0, 1, 1], [], []>} : vector<2x512xf32>, vector<512x256xf32>, vector<2x256xf32> -> vector<2x256xf32>
    %36 = vector.shape_cast %35 : vector<2x256xf32> to vector<1x2x256xf32>
    %cst_22 = arith.constant dense<0.000000e+00> : vector<1xf32>
    %37 = vector.multi_reduction <add>, %36, %cst_22 [1, 2] : vector<1x2x256xf32> to vector<1xf32>
    %38 = vector.shape_cast %37 : vector<1xf32> to vector<1x1x1xf32>
    %39 = vector.extract %38[0, 0, 0] : f32 from vector<1x1x1xf32>
    %cst_23 = arith.constant 5.120000e+02 : f32
    %40 = arith.divf %39, %cst_23 : f32
    %41 = vector.broadcast %40 : f32 to vector<2x256xf32>
    %42 = arith.subf %35, %41 : vector<2x256xf32>
    %43 = arith.mulf %42, %42 : vector<2x256xf32>
    %44 = vector.shape_cast %43 : vector<2x256xf32> to vector<1x2x256xf32>
    %cst_24 = arith.constant dense<0.000000e+00> : vector<1xf32>
    %45 = vector.multi_reduction <add>, %44, %cst_24 [1, 2] : vector<1x2x256xf32> to vector<1xf32>
    %46 = vector.shape_cast %45 : vector<1xf32> to vector<1x1x1xf32>
    %47 = vector.extract %46[0, 0, 0] : f32 from vector<1x1x1xf32>
    %cst_25 = arith.constant 5.120000e+02 : f32
    %48 = arith.divf %47, %cst_25 : f32
    %c0_26 = arith.constant 0 : index
    %49 = memref.load %arg6[%c0_26] : memref<2xf32, #tpu.memory_space<smem>>
    %c1 = arith.constant 1 : index
    %50 = memref.load %arg6[%c1] : memref<2xf32, #tpu.memory_space<smem>>
    %51 = vector.broadcast %40 : f32 to vector<2x256xf32>
    %52 = arith.subf %35, %51 : vector<2x256xf32>
    %cst_27 = arith.constant 9.99999974E-6 : f32
    %53 = arith.addf %48, %cst_27 : f32
    %54 = math.rsqrt %53 : f32
    %55 = vector.broadcast %54 : f32 to vector<2x256xf32>
    %56 = arith.mulf %52, %55 : vector<2x256xf32>
    %57 = vector.broadcast %49 : f32 to vector<2x256xf32>
    %58 = arith.mulf %56, %57 : vector<2x256xf32>
    %59 = vector.broadcast %50 : f32 to vector<2x256xf32>
    %60 = arith.addf %58, %59 : vector<2x256xf32>
    %61 = arith.negf %60 : vector<2x256xf32>
    %62 = math.exp %61 : vector<2x256xf32>
    %cst_28 = arith.constant 1.000000e+00 : f32
    %63 = vector.broadcast %cst_28 : f32 to vector<2x256xf32>
    %64 = arith.addf %63, %62 : vector<2x256xf32>
    %65 = arith.divf %63, %64 : vector<2x256xf32>
    %66 = vector.shape_cast %65 : vector<2x256xf32> to vector<2x1x256xf32>
    %67 = vector.broadcast %66 : vector<2x1x256xf32> to vector<2x32x256xf32>
    %68 = arith.mulf %28, %67 : vector<2x32x256xf32>
    %c0_29 = arith.constant 0 : index
    %c0_30 = arith.constant 0 : index
    %c0_31 = arith.constant 0 : index
    %69 = vector.load %arg7[%c0_29, %c0_30, %c0_31] : memref<2x32x256xf32, #tpu.memory_space<vmem>>, vector<2x32x256xf32>
    tpu.vector_store %arg7[%c0_29, %c0_30, %c0_31], %68 {strides = array<i32>} : memref<2x32x256xf32, #tpu.memory_space<vmem>>, vector<2x32x256xf32>,
    return
  }
}

</mosaic_0001>

<llo_original>
// kernel: tpu_custom_call.1
$region0: #{tpu_custom_call.1}
  #allocation0 [shape = 'u32[]', space=smem, size = 0x4, offset = 0x4, fixed_abs, tag = 'smem constant byte address 0x4 - core index']
  #allocation1 [shape = 'u32[144,128]{1,0:T(1,128)}', space=vmem, size = 0x12000, scoped, tag = 'internal scratch']
  %s0 = inlined_call_operand.hbm [shape: f32[2,32,256], index: 0, kind: input, shape index: {}]
  %s1 = inlined_call_operand.vmem [shape: f32[32,2], index: 1, kind: input, shape index: {}]
  %s2 = inlined_call_operand.vmem [shape: f32[1,2], index: 2, kind: input, shape index: {}]
  %s3 = inlined_call_operand.vmem [shape: f32[2,32], index: 3, kind: input, shape index: {}]
  %s4 = inlined_call_operand.vmem [shape: f32[1,32], index: 4, kind: input, shape index: {}]
  %s5 = inlined_call_operand.hbm [shape: f32[512,256], index: 5, kind: input, shape index: {}]
  %s6 = inlined_call_operand.vmem [shape: f32[2], index: 6, kind: input, shape index: {}]
  %s7 = inlined_call_operand.hbm [shape: f32[2,32,256], index: 7, kind: output, shape index: {}]
  %s8 = sld [smem:[#allocation0]]
  $region50: #{tpu_custom_call.1} parent=0
    _
  %s10 = ssub.s32 1, %s8
  %s11 = scalar_select 0, %s10, %s8
  $region1: #{tpu_custom_call.1} parent=0
    #allocation2 [shape = 'u8[65536]{0}', space=vmem, size = 0x10000, scoped, tag = 'input window, operand 0, single buffered']
    #allocation3 [shape = 's32[1]{0}', space=sflag, size = 0x4, scoped, tag = 'scoped memory for tpu_custom_call.1']
    #allocation4 [shape = 's32[1]{0}', space=sflag, size = 0x4, scoped, tag = 'scoped memory for tpu_custom_call.1']
    #allocation5 [shape = 's32[1]{0}', space=sflag, size = 0x4, scoped, tag = 'scoped memory for tpu_custom_call.1']
    #allocation6 [shape = 'u8[524288]{0}', space=vmem, size = 0x80000, scoped, tag = 'input window, operand 5, single buffered']
    #allocation7 [shape = 's32[1]{0}', space=sflag, size = 0x4, scoped, tag = 'scoped memory for tpu_custom_call.1']
    #allocation8 [shape = 'u8[512]{0}', space=smem, size = 0x200, scoped, tag = 'input window, operand 6, single buffered']
    #allocation9 [shape = 'u8[65536]{0}', space=vmem, size = 0x10000, scoped, tag = 'output window, operand 0, single buffered']
    %12 = vsyncpa [#allocation3], 0
    %13 = vsyncpa [#allocation7], 0
    %14 = vsyncpa [#allocation5], 0
    %15 = vsyncpa [#allocation4], 0
    // Predicated region
    $region2: #{tpu_custom_call.1} parent=1 // pred_check
      _
    $region3: #{tpu_custom_call.1} parent=1 // pred_check_branch
      %17 = sbr.rel (0) target = $region5
    $region4: #{tpu_custom_call.1} parent=1 // pred_region
      %s19 = ssub.s32 2048, 2048
      %20 = vsyncadd [#allocation3], %s19
      %s21 = sshll.u32 [#allocation2], 4
      %s22 = int_to_ptr.vmem [resolvable:$true] %s21
      %27 = dma.hbm_to_vmem [thread:$0]  %s0, 2048, %s22, [#allocation3], 256, 256, 16
    $region5: #{tpu_custom_call.1} parent=1 // pred_fallthru
      _
    // Predicated region
    $region6: #{tpu_custom_call.1} parent=1 // pred_check
      _
    $region7: #{tpu_custom_call.1} parent=1 // pred_check_branch
      %29 = sbr.rel (0) target = $region9
    $region8: #{tpu_custom_call.1} parent=1 // pred_region
      _
    $region9: #{tpu_custom_call.1} parent=1 // pred_fallthru
      _
    // Predicated region
    $region10: #{tpu_custom_call.1} parent=1 // pred_check
      _
    $region11: #{tpu_custom_call.1} parent=1 // pred_check_branch
      %31 = sbr.rel (0) target = $region13
    $region12: #{tpu_custom_call.1} parent=1 // pred_region
      _
    $region13: #{tpu_custom_call.1} parent=1 // pred_fallthru
      _
    // Predicated region
    $region14: #{tpu_custom_call.1} parent=1 // pred_check
      _
    $region15: #{tpu_custom_call.1} parent=1 // pred_check_branch
      %33 = sbr.rel (0) target = $region17
    $region16: #{tpu_custom_call.1} parent=1 // pred_region
      _
    $region17: #{tpu_custom_call.1} parent=1 // pred_fallthru
      _
    // Predicated region
    $region18: #{tpu_custom_call.1} parent=1 // pred_check
      _
    $region19: #{tpu_custom_call.1} parent=1 // pred_check_branch
      %35 = sbr.rel (0) target = $region21
    $region20: #{tpu_custom_call.1} parent=1 // pred_region
      _
    $region21: #{tpu_custom_call.1} parent=1 // pred_fallthru
      _
    // Predicated region
    $region22: #{tpu_custom_call.1} parent=1 // pred_check
      _
    $region23: #{tpu_custom_call.1} parent=1 // pred_check_branch
      %37 = sbr.rel (0) target = $region25
    $region24: #{tpu_custom_call.1} parent=1 // pred_region
      %s39 = ssub.s32 16384, 16384
      %40 = vsyncadd [#allocation7], %s39
      %s41 = sshll.u32 [#allocation6], 4
      %s42 = int_to_ptr.vmem [resolvable:$true] %s41
      %47 = dma.hbm_to_vmem [thread:$0]  %s5, 16384, %s42, [#allocation7], 256, 256, 16
    $region25: #{tpu_custom_call.1} parent=1 // pred_fallthru
      _
    // Predicated region
    $region26: #{tpu_custom_call.1} parent=1 // pred_check
      _
    $region27: #{tpu_custom_call.1} parent=1 // pred_check_branch
      %49 = sbr.rel (0) target = $region29
    $region28: #{tpu_custom_call.1} parent=1 // pred_region
      %s51 = ssub.s32 16, 16
      %52 = vsyncadd [#allocation5], %s51
      %s54 = sshll.u32 %s6, 4
      %s55 = int_to_ptr.vmem [resolvable:$true] %s54
      %57 = dma.vmem_to_smem %s55, 16, [#allocation8], [#allocation5]
    $region29: #{tpu_custom_call.1} parent=1 // pred_fallthru
      _
    // Predicated region
    $region30: #{tpu_custom_call.1} parent=1 // pred_check
      _
    $region31: #{tpu_custom_call.1} parent=1 // pred_check_branch
      %59 = sbr.rel (0) target = $region33
    $region32: #{tpu_custom_call.1} parent=1 // pred_region
      %60 = dma.done [#allocation3], 2048
    $region33: #{tpu_custom_call.1} parent=1 // pred_fallthru
      _
    // Predicated region
    $region34: #{tpu_custom_call.1} parent=1 // pred_check
      _
    $region35: #{tpu_custom_call.1} parent=1 // pred_check_branch
      %62 = sbr.rel (0) target = $region37
    $region36: #{tpu_custom_call.1} parent=1 // pred_region
      %63 = dma.done [#allocation7], 16384
    $region37: #{tpu_custom_call.1} parent=1 // pred_fallthru
      _
    // Predicated region
    $region38: #{tpu_custom_call.1} parent=1 // pred_check
      _
    $region39: #{tpu_custom_call.1} parent=1 // pred_check_branch
      %65 = sbr.rel (0) target = $region41
    $region40: #{tpu_custom_call.1} parent=1 // pred_region
      %66 = dma.done [#allocation5], 16
    $region41: #{tpu_custom_call.1} parent=1 // pred_fallthru
      _
    %67 = sfence
    %v68 = vld [vmem:[#allocation2] sm:$0xff]
    %v69 = vld [vmem:[#allocation2 + $0x8] sm:$0xff]
    %v70 = vld [vmem:[#allocation2 + $0x10] sm:$0xff]
    %v71 = vld [vmem:[#allocation2 + $0x18] sm:$0xff]
    %v72 = vld [vmem:[#allocation2 + $0x20] sm:$0xff]
    %v73 = vld [vmem:[#allocation2 + $0x28] sm:$0xff]
    %v74 = vld [vmem:[#allocation2 + $0x30] sm:$0xff]
    %v75 = vld [vmem:[#allocation2 + $0x38] sm:$0xff]
    %v76 = vld [vmem:[#allocation2 + $0x40] sm:$0xff]
    %v77 = vld [vmem:[#allocation2 + $0x48] sm:$0xff]
    %v78 = vld [vmem:[#allocation2 + $0x50] sm:$0xff]
    %v79 = vld [vmem:[#allocation2 + $0x58] sm:$0xff]
    %v80 = vld [vmem:[#allocation2 + $0x60] sm:$0xff]
    %v81 = vld [vmem:[#allocation2 + $0x68] sm:$0xff]
    %v82 = vld [vmem:[#allocation2 + $0x70] sm:$0xff]
    %v83 = vld [vmem:[#allocation2 + $0x78] sm:$0xff]
    %v84 = vadd.f32 %v68, %v69
    %85 = vadd.xlane.f32.xlu0 %v84
    %v86 = vpop.xlane.xlu0 %85
    %v87 = vadd.f32 %v70, %v71
    %88 = vadd.xlane.f32.xlu0 %v87
    %v89 = vpop.xlane.xlu0 %88
    %v90 = vadd.f32 %v72, %v73
    %91 = vadd.xlane.f32.xlu0 %v90
    %v92 = vpop.xlane.xlu0 %91
    %v93 = vadd.f32 %v74, %v75
    %94 = vadd.xlane.f32.xlu0 %v93
    %v95 = vpop.xlane.xlu0 %94
    %v96 = vadd.f32 %v76, %v77
    %97 = vadd.xlane.f32.xlu0 %v96
    %v98 = vpop.xlane.xlu0 %97
    %v99 = vadd.f32 %v78, %v79
    %100 = vadd.xlane.f32.xlu0 %v99
    %v101 = vpop.xlane.xlu0 %100
    %v102 = vadd.f32 %v80, %v81
    %103 = vadd.xlane.f32.xlu0 %v102
    %v104 = vpop.xlane.xlu0 %103
    %v105 = vadd.f32 %v82, %v83
    %106 = vadd.xlane.f32.xlu0 %v105
    %v107 = vpop.xlane.xlu0 %106
    %v108 = vrcp.pop 256.0
    %v109 = vmul.f32 %v86, %v108
    %v110 = vmul.f32 %v89, %v108
    %v111 = vmul.f32 %v92, %v108
    %v112 = vmul.f32 %v95, %v108
    %v113 = vmul.f32 %v98, %v108
    %v114 = vmul.f32 %v101, %v108
    %v115 = vmul.f32 %v104, %v108
    %v116 = vmul.f32 %v107, %v108
    %v117 = vmax.f32 %v68, %v69
    %118 = vmax.xlane.f32.xlu0 %v117
    %v119 = vpop.xlane.xlu0 %118
    %v120 = vmax.f32 %v70, %v71
    %121 = vmax.xlane.f32.xlu0 %v120
    %v122 = vpop.xlane.xlu0 %121
    %v123 = vmax.f32 %v72, %v73
    %124 = vmax.xlane.f32.xlu0 %v123
    %v125 = vpop.xlane.xlu0 %124
    %v126 = vmax.f32 %v74, %v75
    %127 = vmax.xlane.f32.xlu0 %v126
    %v128 = vpop.xlane.xlu0 %127
    %v129 = vmax.f32 %v76, %v77
    %130 = vmax.xlane.f32.xlu0 %v129
    %v131 = vpop.xlane.xlu0 %130
    %v132 = vmax.f32 %v78, %v79
    %133 = vmax.xlane.f32.xlu0 %v132
    %v134 = vpop.xlane.xlu0 %133
    %v135 = vmax.f32 %v80, %v81
    %136 = vmax.xlane.f32.xlu0 %v135
    %v137 = vpop.xlane.xlu0 %136
    %v138 = vmax.f32 %v82, %v83
    %139 = vmax.xlane.f32.xlu0 %v138
    %v140 = vpop.xlane.xlu0 %139
    %v149 = vlaneseq
    %v150 = vand.u32 %v149, 127
    %v151 = vlaneseq
    %v152 = vshrl.u32 %v151, 7
    %v153 = vsub.s32 %v150, %v152
    %v154 = vrot.slane %v109, %v153
    %v155 = vadd.s32 %v150, 4294967288
    %v156 = vlaneseq
    %v157 = vshrl.u32 %v156, 7
    %v158 = vsub.s32 %v155, %v157
    %v159 = vrot.slane %v110, %v158
    %vm160 = vcmask 130112
    %v161 = vsel %vm160, %v159, %v154
    %v162 = vadd.s32 %v150, 4294967280
    %v163 = vlaneseq
    %v164 = vshrl.u32 %v163, 7
    %v165 = vsub.s32 %v162, %v164
    %v166 = vrot.slane %v111, %v165
    %vm167 = vcmask 195712
    %v168 = vsel %vm167, %v166, %v161
    %v169 = vadd.s32 %v150, 4294967272
    %v170 = vlaneseq
    %v171 = vshrl.u32 %v170, 7
    %v172 = vsub.s32 %v169, %v171
    %v173 = vrot.slane %v112, %v172
    %vm174 = vcmask 261312
    %v175 = vsel %vm174, %v173, %v168
    %v176 = vlaneseq
    %v177 = vshrl.u32 %v176, 7
    %v178 = vsub.s32 %v150, %v177
    %v179 = vrot.slane %v113, %v178
    %v180 = vlaneseq
    %v181 = vshrl.u32 %v180, 7
    %v182 = vsub.s32 %v155, %v181
    %v183 = vrot.slane %v114, %v182
    %v184 = vsel %vm160, %v183, %v179
    %v185 = vlaneseq
    %v186 = vshrl.u32 %v185, 7
    %v187 = vsub.s32 %v162, %v186
    %v188 = vrot.slane %v115, %v187
    %v189 = vsel %vm167, %v188, %v184
    %v190 = vlaneseq
    %v191 = vshrl.u32 %v190, 7
    %v192 = vsub.s32 %v169, %v191
    %v193 = vrot.slane %v116, %v192
    %v194 = vsel %vm174, %v193, %v189
    %vm195 = vcmask 1041409
    %v196 = vsel %vm195, %v194, %v175
    %v206 = vlaneseq
    %v207 = vshrl.u32 %v206, 7
    %v208 = vsub.s32 %v150, %v207
    %v209 = vrot.slane %v119, %v208
    %v210 = vlaneseq
    %v211 = vshrl.u32 %v210, 7
    %v212 = vsub.s32 %v155, %v211
    %v213 = vrot.slane %v122, %v212
    %v214 = vsel %vm160, %v213, %v209
    %v215 = vlaneseq
    %v216 = vshrl.u32 %v215, 7
    %v217 = vsub.s32 %v162, %v216
    %v218 = vrot.slane %v125, %v217
    %v219 = vsel %vm167, %v218, %v214
    %v220 = vlaneseq
    %v221 = vshrl.u32 %v220, 7
    %v222 = vsub.s32 %v169, %v221
    %v223 = vrot.slane %v128, %v222
    %v224 = vsel %vm174, %v223, %v219
    %v225 = vlaneseq
    %v226 = vshrl.u32 %v225, 7
    %v227 = vsub.s32 %v150, %v226
    %v228 = vrot.slane %v131, %v227
    %v229 = vlaneseq
    %v230 = vshrl.u32 %v229, 7
    %v231 = vsub.s32 %v155, %v230
    %v232 = vrot.slane %v134, %v231
    %v233 = vsel %vm160, %v232, %v228
    %v234 = vlaneseq
    %v235 = vshrl.u32 %v234, 7
    %v236 = vsub.s32 %v162, %v235
    %v237 = vrot.slane %v137, %v236
    %v238 = vsel %vm167, %v237, %v233
    %v239 = vlaneseq
    %v240 = vshrl.u32 %v239, 7
    %v241 = vsub.s32 %v169, %v240
    %v242 = vrot.slane %v140, %v241
    %v243 = vsel %vm174, %v242, %v238
    %vm244 = vcmask 1043459
    %v245 = vsel %vm244, %v243, %v224
    %vm247 = vcmask 1041408
    %v248 = vsel %vm247, %v196, %v245
    %v249 = vld [vmem:[%s1] sm:$0xff]
    %v250 = vld [vmem:[%s1 + $0x8] sm:$0xff]
    %v251 = vld [vmem:[%s1 + $0x10] sm:$0xff]
    %v252 = vld [vmem:[%s1 + $0x18] sm:$0xff]
    %v253 = vld [vmem:[%s2] sm:$0x1]
    %v255 = vlaneseq
    %v256 = vshrl.u32 %v255, 7
    %v257 = vsub.s32 0, %v256
    %v258 = vrot.slane %v253, %v257
    %vm260 = vcmask 261120
    %v262 = vsel %vm260, %v248, 0
    %264 = vmatprep.subr.mxu0 0.0
    %265 = vmatpush1.msra.mxu0 %v249
    %266 = vmatprep.subr.mxu0 0.0
    %267 = vmatpush1.msra.mxu0 %v250
    %268 = vmatprep.subr.mxu0 0.0
    %269 = vmatpush1.msra.mxu0 %v251
    %270 = vmatprep.subr.mxu0 0.0
    %271 = vmatpush1.msra.mxu0 %v252
    %272 = vmatprep.subr.mxu0 0.0
    %273 = vmatpush1.msra.mxu0 0.0
    %274 = vmatprep.subr.mxu0 0.0
    %275 = vmatpush1.msra.mxu0 0.0
    %276 = vmatprep.subr.mxu0 0.0
    %277 = vmatpush1.msra.mxu0 0.0
    %278 = vmatprep.subr.mxu0 0.0
    %279 = vmatpush1.msra.mxu0 0.0
    %280 = vmatprep.subr.mxu0 0.0
    %281 = vmatpush1.msra.mxu0 0.0
    %282 = vmatprep.subr.mxu0 0.0
    %283 = vmatpush1.msra.mxu0 0.0
    %284 = vmatprep.subr.mxu0 0.0
    %285 = vmatpush1.msra.mxu0 0.0
    %286 = vmatprep.subr.mxu0 0.0
    %287 = vmatpush1.msra.mxu0 0.0
    %288 = vmatprep.subr.mxu0 0.0
    %289 = vmatpush1.msra.mxu0 0.0
    %290 = vmatprep.subr.mxu0 0.0
    %291 = vmatpush1.msra.mxu0 0.0
    %292 = vmatprep.subr.mxu0 0.0
    %293 = vmatpush1.msra.mxu0 0.0
    %294 = vmatprep.subr.mxu0 0.0
    %295 = vmatpush1.msra.mxu0 0.0
    %296 = vmatprep.subr.mxu0 0.0
    %297 = vmatpush1.msra.mxu0 0.0
    %298 = vmatprep.subr.mxu0 0.0
    %299 = vmatpush1.msra.mxu0 0.0
    %300 = vmatprep.subr.mxu0 0.0
    %301 = vmatpush1.msra.mxu0 0.0
    %302 = vmatprep.subr.mxu0 0.0
    %303 = vmatpush1.msra.mxu0 0.0
    %304 = vmatprep.subr.mxu0 0.0
    %305 = vmatpush1.msra.mxu0 0.0
    %306 = vmatprep.subr.mxu0 0.0
    %307 = vmatpush1.msra.mxu0 0.0
    %308 = vmatprep.subr.mxu0 0.0
    %309 = vmatpush1.msra.mxu0 0.0
    %310 = vmatprep.subr.mxu0 0.0
    %311 = vmatpush1.msra.mxu0 0.0
    %312 = vmatprep.subr.mxu0 0.0
    %313 = vmatpush1.msra.mxu0 0.0
    %314 = vmatprep.subr.mxu0 0.0
    %315 = vmatpush1.msra.mxu0 0.0
    %316 = vmatprep.subr.mxu0 0.0
    %317 = vmatpush1.msra.mxu0 0.0
    %318 = vmatprep.subr.mxu0 0.0
    %319 = vmatpush1.msra.mxu0 0.0
    %320 = vmatprep.subr.mxu0 0.0
    %321 = vmatpush1.msra.mxu0 0.0
    %322 = vmatprep.subr.mxu0 0.0
    %323 = vmatpush1.msra.mxu0 0.0
    %324 = vmatprep.subr.mxu0 0.0
    %325 = vmatpush1.msra.mxu0 0.0
    %326 = vmatprep.subr.mxu0 0.0
    %327 = vmatpush1.msra.mxu0 0.0
    %328 = vmatprep.mubr.f32.mxu0 0.0
    %329 = vmatmul.mubr.f32.gmra.mrb[0].mxu0 %v262
    %v330 = vpop.f32.mrb[0].mxu0
    %v331 = vadd.f32 %v258, %v330
    %v332 = vpop.f32.mrb[0].mxu0
    %333 = vdwg.mxu0
    %v334 = vmax.f32 %v331, 0.0
    %v335 = vld [vmem:[%s3] sm:$0x3]
    %v336 = vld [vmem:[%s4] sm:$0x1]
    %v338 = vlaneseq
    %v339 = vshrl.u32 %v338, 7
    %v340 = vsub.s32 0, %v339
    %v341 = vrot.slane %v336, %v340
    %vm343 = vcmask 15360
    %v345 = vsel %vm343, %v334, 0
    %v348 = vsel %vm247, %v335, 0
    %350 = vmatprep.subr.mxu0 0.0
    %351 = vmatpush1.msra.mxu0 %v348
    %352 = vmatprep.subr.mxu0 0.0
    %353 = vmatpush1.msra.mxu0 0.0
    %354 = vmatprep.subr.mxu0 0.0
    %355 = vmatpush1.msra.mxu0 0.0
    %356 = vmatprep.subr.mxu0 0.0
    %357 = vmatpush1.msra.mxu0 0.0
    %358 = vmatprep.subr.mxu0 0.0
    %359 = vmatpush1.msra.mxu0 0.0
    %360 = vmatprep.subr.mxu0 0.0
    %361 = vmatpush1.msra.mxu0 0.0
    %362 = vmatprep.subr.mxu0 0.0
    %363 = vmatpush1.msra.mxu0 0.0
    %364 = vmatprep.subr.mxu0 0.0
    %365 = vmatpush1.msra.mxu0 0.0
    %366 = vmatprep.subr.mxu0 0.0
    %367 = vmatpush1.msra.mxu0 0.0
    %368 = vmatprep.subr.mxu0 0.0
    %369 = vmatpush1.msra.mxu0 0.0
    %370 = vmatprep.subr.mxu0 0.0
    %371 = vmatpush1.msra.mxu0 0.0
    %372 = vmatprep.subr.mxu0 0.0
    %373 = vmatpush1.msra.mxu0 0.0
    %374 = vmatprep.subr.mxu0 0.0
    %375 = vmatpush1.msra.mxu0 0.0
    %376 = vmatprep.subr.mxu0 0.0
    %377 = vmatpush1.msra.mxu0 0.0
    %378 = vmatprep.subr.mxu0 0.0
    %379 = vmatpush1.msra.mxu0 0.0
    %380 = vmatprep.subr.mxu0 0.0
    %381 = vmatpush1.msra.mxu0 0.0
    %382 = vmatprep.subr.mxu0 0.0
    %383 = vmatpush1.msra.mxu0 0.0
    %384 = vmatprep.subr.mxu0 0.0
    %385 = vmatpush1.msra.mxu0 0.0
    %386 = vmatprep.subr.mxu0 0.0
    %387 = vmatpush1.msra.mxu0 0.0
    %388 = vmatprep.subr.mxu0 0.0
    %389 = vmatpush1.msra.mxu0 0.0
    %390 = vmatprep.subr.mxu0 0.0
    %391 = vmatpush1.msra.mxu0 0.0
    %392 = vmatprep.subr.mxu0 0.0
    %393 = vmatpush1.msra.mxu0 0.0
    %394 = vmatprep.subr.mxu0 0.0
    %395 = vmatpush1.msra.mxu0 0.0
    %396 = vmatprep.subr.mxu0 0.0
    %397 = vmatpush1.msra.mxu0 0.0
    %398 = vmatprep.subr.mxu0 0.0
    %399 = vmatpush1.msra.mxu0 0.0
    %400 = vmatprep.subr.mxu0 0.0
    %401 = vmatpush1.msra.mxu0 0.0
    %402 = vmatprep.subr.mxu0 0.0
    %403 = vmatpush1.msra.mxu0 0.0
    %404 = vmatprep.subr.mxu0 0.0
    %405 = vmatpush1.msra.mxu0 0.0
    %406 = vmatprep.subr.mxu0 0.0
    %407 = vmatpush1.msra.mxu0 0.0
    %408 = vmatprep.subr.mxu0 0.0
    %409 = vmatpush1.msra.mxu0 0.0
    %410 = vmatprep.subr.mxu0 0.0
    %411 = vmatpush1.msra.mxu0 0.0
    %412 = vmatprep.subr.mxu0 0.0
    %413 = vmatpush1.msra.mxu0 0.0
    %414 = vmatprep.mubr.f32.mxu0 0.0
    %415 = vmatmul.mubr.f32.gmra.mrb[0].mxu0 %v345
    %v416 = vpop.f32.mrb[0].mxu0
    %v417 = vadd.f32 %v341, %v416
    %v418 = vpop.f32.mrb[0].mxu0
    %419 = vdwg.mxu0
    %v421 = vrot.slane %v417, 2
    %v423 = vadd.f32 %v417, %v421
    %v424 = vxor.u32 %v423, 2147483648
    %v425 = vmul.f32 %v424, 1.442695
    %v426 = vpow.pop %v425
    %v427 = vadd.f32 %v426, 1.0
    %v428 = vrcp.pop %v427
    %v429 = vmul.f32 1.0, %v428
    %v430 = vlaneseq
    %v431 = vshrl.u32 %v430, 7
    %v432 = vsub.s32 0, %v431
    %v433 = vrot.slane %v429, %v432
    %435 = vbcast.lane.b32.xlu0 %v433, 256
    %v436 = vpop.permute.xlu0 %435
    %s438 = sor.u32 256, 8
    %439 = vbcast.lane.b32.xlu0 %v433, %s438
    %v440 = vpop.permute.xlu0 %439
    %s442 = sor.u32 256, 16
    %443 = vbcast.lane.b32.xlu0 %v433, %s442
    %v444 = vpop.permute.xlu0 %443
    %s446 = sor.u32 256, 24
    %447 = vbcast.lane.b32.xlu0 %v433, %s446
    %v448 = vpop.permute.xlu0 %447
    %v449 = vlaneseq
    %v450 = vshrl.u32 %v449, 7
    %v451 = vsub.s32 1, %v450
    %v452 = vrot.slane %v429, %v451
    %454 = vbcast.lane.b32.xlu0 %v452, 256
    %v455 = vpop.permute.xlu0 %454
    %s457 = sor.u32 256, 8
    %458 = vbcast.lane.b32.xlu0 %v452, %s457
    %v459 = vpop.permute.xlu0 %458
    %s461 = sor.u32 256, 16
    %462 = vbcast.lane.b32.xlu0 %v452, %s461
    %v463 = vpop.permute.xlu0 %462
    %s465 = sor.u32 256, 24
    %466 = vbcast.lane.b32.xlu0 %v452, %s465
    %v467 = vpop.permute.xlu0 %466
    %v468 = vmul.f32 %v68, %v436
    %v469 = vmul.f32 %v69, %v436
    %v470 = vmul.f32 %v70, %v440
    %v471 = vmul.f32 %v71, %v440
    %v472 = vmul.f32 %v72, %v444
    %v473 = vmul.f32 %v73, %v444
    %v474 = vmul.f32 %v74, %v448
    %v475 = vmul.f32 %v75, %v448
    %v476 = vmul.f32 %v76, %v455
    %v477 = vmul.f32 %v77, %v455
    %v478 = vmul.f32 %v78, %v459
    %v479 = vmul.f32 %v79, %v459
    %v480 = vmul.f32 %v80, %v463
    %v481 = vmul.f32 %v81, %v463
    %v482 = vmul.f32 %v82, %v467
    %v483 = vmul.f32 %v83, %v467
    %v484 = vmax.f32 %v468, %v470
    %v485 = vmax.f32 %v484, %v472
    %v486 = vmax.f32 %v485, %v474
    %v487 = vrot.slane %v486, 4
    %v488 = vmax.f32 %v486, %v487
    %v489 = vrot.slane %v488, 2
    %v490 = vmax.f32 %v488, %v489
    %v491 = vrot.slane %v490, 1
    %v492 = vmax.f32 %v490, %v491
    %v493 = vmax.f32 %v469, %v471
    %v494 = vmax.f32 %v493, %v473
    %v495 = vmax.f32 %v494, %v475
    %v496 = vrot.slane %v495, 4
    %v497 = vmax.f32 %v495, %v496
    %v498 = vrot.slane %v497, 2
    %v499 = vmax.f32 %v497, %v498
    %v500 = vrot.slane %v499, 1
    %v501 = vmax.f32 %v499, %v500
    %v502 = vmax.f32 %v476, %v478
    %v503 = vmax.f32 %v502, %v480
    %v504 = vmax.f32 %v503, %v482
    %v505 = vrot.slane %v504, 4
    %v506 = vmax.f32 %v504, %v505
    %v507 = vrot.slane %v506, 2
    %v508 = vmax.f32 %v506, %v507
    %v509 = vrot.slane %v508, 1
    %v510 = vmax.f32 %v508, %v509
    %v511 = vmax.f32 %v477, %v479
    %v512 = vmax.f32 %v511, %v481
    %v513 = vmax.f32 %v512, %v483
    %v514 = vrot.slane %v513, 4
    %v515 = vmax.f32 %v513, %v514
    %v516 = vrot.slane %v515, 2
    %v517 = vmax.f32 %v515, %v516
    %v518 = vrot.slane %v517, 1
    %v519 = vmax.f32 %v517, %v518
    %v520 = vadd.f32 %v468, %v470
    %v521 = vadd.f32 %v520, %v472
    %v522 = vadd.f32 %v521, %v474
    %v523 = vrot.slane %v522, 4
    %v524 = vadd.f32 %v522, %v523
    %v525 = vrot.slane %v524, 2
    %v526 = vadd.f32 %v524, %v525
    %v527 = vrot.slane %v526, 1
    %v528 = vadd.f32 %v526, %v527
    %v529 = vadd.f32 %v469, %v471
    %v530 = vadd.f32 %v529, %v473
    %v531 = vadd.f32 %v530, %v475
    %v532 = vrot.slane %v531, 4
    %v533 = vadd.f32 %v531, %v532
    %v534 = vrot.slane %v533, 2
    %v535 = vadd.f32 %v533, %v534
    %v536 = vrot.slane %v535, 1
    %v537 = vadd.f32 %v535, %v536
    %v538 = vadd.f32 %v476, %v478
    %v539 = vadd.f32 %v538, %v480
    %v540 = vadd.f32 %v539, %v482
    %v541 = vrot.slane %v540, 4
    %v542 = vadd.f32 %v540, %v541
    %v543 = vrot.slane %v542, 2
    %v544 = vadd.f32 %v542, %v543
    %v545 = vrot.slane %v544, 1
    %v546 = vadd.f32 %v544, %v545
    %v547 = vadd.f32 %v477, %v479
    %v548 = vadd.f32 %v547, %v481
    %v549 = vadd.f32 %v548, %v483
    %v550 = vrot.slane %v549, 4
    %v551 = vadd.f32 %v549, %v550
    %v552 = vrot.slane %v551, 2
    %v553 = vadd.f32 %v551, %v552
    %v554 = vrot.slane %v553, 1
    %v555 = vadd.f32 %v553, %v554
    %v556 = vrcp.pop 32.0
    %v557 = vmul.f32 %v528, %v556
    %v558 = vmul.f32 %v537, %v556
    %v559 = vmul.f32 %v546, %v556
    %v560 = vmul.f32 %v555, %v556
    %v565 = vsel %vm195, %v510, %v492
    %v566 = vsel %vm195, %v519, %v501
    %v573 = vsel %vm195, %v559, %v557
    %v574 = vsel %vm195, %v560, %v558
    %v577 = vld [vmem:[#allocation6] sm:$0xff]
    %v578 = vld [vmem:[#allocation6 + $0x8] sm:$0xff]
    %v579 = vld [vmem:[#allocation6 + $0x10] sm:$0xff]
    %v580 = vld [vmem:[#allocation6 + $0x18] sm:$0xff]
    %v581 = vld [vmem:[#allocation6 + $0x20] sm:$0xff]
    %v582 = vld [vmem:[#allocation6 + $0x28] sm:$0xff]
    %v583 = vld [vmem:[#allocation6 + $0x30] sm:$0xff]
    %v584 = vld [vmem:[#allocation6 + $0x38] sm:$0xff]
    %v585 = vld [vmem:[#allocation6 + $0x40] sm:$0xff]
    %v586 = vld [vmem:[#allocation6 + $0x48] sm:$0xff]
    %v587 = vld [vmem:[#allocation6 + $0x50] sm:$0xff]
    %v588 = vld [vmem:[#allocation6 + $0x58] sm:$0xff]
    %v589 = vld [vmem:[#allocation6 + $0x60] sm:$0xff]
    %v590 = vld [vmem:[#allocation6 + $0x68] sm:$0xff]
    %v591 = vld [vmem:[#allocation6 + $0x70] sm:$0xff]
    %v592 = vld [vmem:[#allocation6 + $0x78] sm:$0xff]
    %v593 = vld [vmem:[#allocation6 + $0x80] sm:$0xff]
    %v594 = vld [vmem:[#allocation6 + $0x88] sm:$0xff]
    %v595 = vld [vmem:[#allocation6 + $0x90] sm:$0xff]
    %v596 = vld [vmem:[#allocation6 + $0x98] sm:$0xff]
    %v597 = vld [vmem:[#allocation6 + $0xa0] sm:$0xff]
    %v598 = vld [vmem:[#allocation6 + $0xa8] sm:$0xff]
    %v599 = vld [vmem:[#allocation6 + $0xb0] sm:$0xff]
    %v600 = vld [vmem:[#allocation6 + $0xb8] sm:$0xff]
    %v601 = vld [vmem:[#allocation6 + $0xc0] sm:$0xff]
    %v602 = vld [vmem:[#allocation6 + $0xc8] sm:$0xff]
    %v603 = vld [vmem:[#allocation6 + $0xd0] sm:$0xff]
    %v604 = vld [vmem:[#allocation6 + $0xd8] sm:$0xff]
    %v605 = vld [vmem:[#allocation6 + $0xe0] sm:$0xff]
    %v606 = vld [vmem:[#allocation6 + $0xe8] sm:$0xff]
    %v607 = vld [vmem:[#allocation6 + $0xf0] sm:$0xff]
    %v608 = vld [vmem:[#allocation6 + $0xf8] sm:$0xff]
    %v609 = vld [vmem:[#allocation6 + $0x100] sm:$0xff]
    %v610 = vld [vmem:[#allocation6 + $0x108] sm:$0xff]
    %v611 = vld [vmem:[#allocation6 + $0x110] sm:$0xff]
    %v612 = vld [vmem:[#allocation6 + $0x118] sm:$0xff]
    %v613 = vld [vmem:[#allocation6 + $0x120] sm:$0xff]
    %v614 = vld [vmem:[#allocation6 + $0x128] sm:$0xff]
    %v615 = vld [vmem:[#allocation6 + $0x130] sm:$0xff]
    %v616 = vld [vmem:[#allocation6 + $0x138] sm:$0xff]
    %v617 = vld [vmem:[#allocation6 + $0x140] sm:$0xff]
    %v618 = vld [vmem:[#allocation6 + $0x148] sm:$0xff]
    %v619 = vld [vmem:[#allocation6 + $0x150] sm:$0xff]
    %v620 = vld [vmem:[#allocation6 + $0x158] sm:$0xff]
    %v621 = vld [vmem:[#allocation6 + $0x160] sm:$0xff]
    %v622 = vld [vmem:[#allocation6 + $0x168] sm:$0xff]
    %v623 = vld [vmem:[#allocation6 + $0x170] sm:$0xff]
    %v624 = vld [vmem:[#allocation6 + $0x178] sm:$0xff]
    %v625 = vld [vmem:[#allocation6 + $0x180] sm:$0xff]
    %v626 = vld [vmem:[#allocation6 + $0x188] sm:$0xff]
    %v627 = vld [vmem:[#allocation6 + $0x190] sm:$0xff]
    %v628 = vld [vmem:[#allocation6 + $0x198] sm:$0xff]
    %v629 = vld [vmem:[#allocation6 + $0x1a0] sm:$0xff]
    %v630 = vld [vmem:[#allocation6 + $0x1a8] sm:$0xff]
    %v631 = vld [vmem:[#allocation6 + $0x1b0] sm:$0xff]
    %v632 = vld [vmem:[#allocation6 + $0x1b8] sm:$0xff]
    %v633 = vld [vmem:[#allocation6 + $0x1c0] sm:$0xff]
    %v634 = vld [vmem:[#allocation6 + $0x1c8] sm:$0xff]
    %v635 = vld [vmem:[#allocation6 + $0x1d0] sm:$0xff]
    %v636 = vld [vmem:[#allocation6 + $0x1d8] sm:$0xff]
    %v637 = vld [vmem:[#allocation6 + $0x1e0] sm:$0xff]
    %v638 = vld [vmem:[#allocation6 + $0x1e8] sm:$0xff]
    %v639 = vld [vmem:[#allocation6 + $0x1f0] sm:$0xff]
    %v640 = vld [vmem:[#allocation6 + $0x1f8] sm:$0xff]
    %v641 = vld [vmem:[#allocation6 + $0x200] sm:$0xff]
    %v642 = vld [vmem:[#allocation6 + $0x208] sm:$0xff]
    %v643 = vld [vmem:[#allocation6 + $0x210] sm:$0xff]
    %v644 = vld [vmem:[#allocation6 + $0x218] sm:$0xff]
    %v645 = vld [vmem:[#allocation6 + $0x220] sm:$0xff]
    %v646 = vld [vmem:[#allocation6 + $0x228] sm:$0xff]
    %v647 = vld [vmem:[#allocation6 + $0x230] sm:$0xff]
    %v648 = vld [vmem:[#allocation6 + $0x238] sm:$0xff]
    %v649 = vld [vmem:[#allocation6 + $0x240] sm:$0xff]
    %v650 = vld [vmem:[#allocation6 + $0x248] sm:$0xff]
    %v651 = vld [vmem:[#allocation6 + $0x250] sm:$0xff]
    %v652 = vld [vmem:[#allocation6 + $0x258] sm:$0xff]
    %v653 = vld [vmem:[#allocation6 + $0x260] sm:$0xff]
    %v654 = vld [vmem:[#allocation6 + $0x268] sm:$0xff]
    %v655 = vld [vmem:[#allocation6 + $0x270] sm:$0xff]
    %v656 = vld [vmem:[#allocation6 + $0x278] sm:$0xff]
    %v657 = vld [vmem:[#allocation6 + $0x280] sm:$0xff]
    %v658 = vld [vmem:[#allocation6 + $0x288] sm:$0xff]
    %v659 = vld [vmem:[#allocation6 + $0x290] sm:$0xff]
    %v660 = vld [vmem:[#allocation6 + $0x298] sm:$0xff]
    %v661 = vld [vmem:[#allocation6 + $0x2a0] sm:$0xff]
    %v662 = vld [vmem:[#allocation6 + $0x2a8] sm:$0xff]
    %v663 = vld [vmem:[#allocation6 + $0x2b0] sm:$0xff]
    %v664 = vld [vmem:[#allocation6 + $0x2b8] sm:$0xff]
    %v665 = vld [vmem:[#allocation6 + $0x2c0] sm:$0xff]
    %v666 = vld [vmem:[#allocation6 + $0x2c8] sm:$0xff]
    %v667 = vld [vmem:[#allocation6 + $0x2d0] sm:$0xff]
    %v668 = vld [vmem:[#allocation6 + $0x2d8] sm:$0xff]
    %v669 = vld [vmem:[#allocation6 + $0x2e0] sm:$0xff]
    %v670 = vld [vmem:[#allocation6 + $0x2e8] sm:$0xff]
    %v671 = vld [vmem:[#allocation6 + $0x2f0] sm:$0xff]
    %v672 = vld [vmem:[#allocation6 + $0x2f8] sm:$0xff]
    %v673 = vld [vmem:[#allocation6 + $0x300] sm:$0xff]
    %v674 = vld [vmem:[#allocation6 + $0x308] sm:$0xff]
    %v675 = vld [vmem:[#allocation6 + $0x310] sm:$0xff]
    %v676 = vld [vmem:[#allocation6 + $0x318] sm:$0xff]
    %v677 = vld [vmem:[#allocation6 + $0x320] sm:$0xff]
    %v678 = vld [vmem:[#allocation6 + $0x328] sm:$0xff]
    %v679 = vld [vmem:[#allocation6 + $0x330] sm:$0xff]
    %v680 = vld [vmem:[#allocation6 + $0x338] sm:$0xff]
    %v681 = vld [vmem:[#allocation6 + $0x340] sm:$0xff]
    %v682 = vld [vmem:[#allocation6 + $0x348] sm:$0xff]
    %v683 = vld [vmem:[#allocation6 + $0x350] sm:$0xff]
    %v684 = vld [vmem:[#allocation6 + $0x358] sm:$0xff]
    %v685 = vld [vmem:[#allocation6 + $0x360] sm:$0xff]
    %v686 = vld [vmem:[#allocation6 + $0x368] sm:$0xff]
    %v687 = vld [vmem:[#allocation6 + $0x370] sm:$0xff]
    %v688 = vld [vmem:[#allocation6 + $0x378] sm:$0xff]
    %v689 = vld [vmem:[#allocation6 + $0x380] sm:$0xff]
    %v690 = vld [vmem:[#allocation6 + $0x388] sm:$0xff]
    %v691 = vld [vmem:[#allocation6 + $0x390] sm:$0xff]
    %v692 = vld [vmem:[#allocation6 + $0x398] sm:$0xff]
    %v693 = vld [vmem:[#allocation6 + $0x3a0] sm:$0xff]
    %v694 = vld [vmem:[#allocation6 + $0x3a8] sm:$0xff]
    %v695 = vld [vmem:[#allocation6 + $0x3b0] sm:$0xff]
    %v696 = vld [vmem:[#allocation6 + $0x3b8] sm:$0xff]
    %v697 = vld [vmem:[#allocation6 + $0x3c0] sm:$0xff]
    %v698 = vld [vmem:[#allocation6 + $0x3c8] sm:$0xff]
    %v699 = vld [vmem:[#allocation6 + $0x3d0] sm:$0xff]
    %v700 = vld [vmem:[#allocation6 + $0x3d8] sm:$0xff]
    %v701 = vld [vmem:[#allocation6 + $0x3e0] sm:$0xff]
    %v702 = vld [vmem:[#allocation6 + $0x3e8] sm:$0xff]
    %v703 = vld [vmem:[#allocation6 + $0x3f0] sm:$0xff]
    %v704 = vld [vmem:[#allocation6 + $0x3f8] sm:$0xff]
    %705 = vmatprep.subr.mxu0 %v578
    %706 = vmatpush1.msra.mxu0 %v577
    %707 = vmatprep.subr.mxu0 %v580
    %708 = vmatpush1.msra.mxu0 %v579
    %709 = vmatprep.subr.mxu0 %v582
    %710 = vmatpush1.msra.mxu0 %v581
    %711 = vmatprep.subr.mxu0 %v584
    %712 = vmatpush1.msra.mxu0 %v583
    %713 = vmatprep.subr.mxu0 %v586
    %714 = vmatpush1.msra.mxu0 %v585
    %715 = vmatprep.subr.mxu0 %v588
    %716 = vmatpush1.msra.mxu0 %v587
    %717 = vmatprep.subr.mxu0 %v590
    %718 = vmatpush1.msra.mxu0 %v589
    %719 = vmatprep.subr.mxu0 %v592
    %720 = vmatpush1.msra.mxu0 %v591
    %721 = vmatprep.subr.mxu0 %v594
    %722 = vmatpush1.msra.mxu0 %v593
    %723 = vmatprep.subr.mxu0 %v596
    %724 = vmatpush1.msra.mxu0 %v595
    %725 = vmatprep.subr.mxu0 %v598
    %726 = vmatpush1.msra.mxu0 %v597
    %727 = vmatprep.subr.mxu0 %v600
    %728 = vmatpush1.msra.mxu0 %v599
    %729 = vmatprep.subr.mxu0 %v602
    %730 = vmatpush1.msra.mxu0 %v601
    %731 = vmatprep.subr.mxu0 %v604
    %732 = vmatpush1.msra.mxu0 %v603
    %733 = vmatprep.subr.mxu0 %v606
    %734 = vmatpush1.msra.mxu0 %v605
    %735 = vmatprep.subr.mxu0 %v608
    %736 = vmatpush1.msra.mxu0 %v607
    %737 = vmatprep.subr.mxu0 %v610
    %738 = vmatpush1.msra.mxu0 %v609
    %739 = vmatprep.subr.mxu0 %v612
    %740 = vmatpush1.msra.mxu0 %v611
    %741 = vmatprep.subr.mxu0 %v614
    %742 = vmatpush1.msra.mxu0 %v613
    %743 = vmatprep.subr.mxu0 %v616
    %744 = vmatpush1.msra.mxu0 %v615
    %745 = vmatprep.subr.mxu0 %v618
    %746 = vmatpush1.msra.mxu0 %v617
    %747 = vmatprep.subr.mxu0 %v620
    %748 = vmatpush1.msra.mxu0 %v619
    %749 = vmatprep.subr.mxu0 %v622
    %750 = vmatpush1.msra.mxu0 %v621
    %751 = vmatprep.subr.mxu0 %v624
    %752 = vmatpush1.msra.mxu0 %v623
    %753 = vmatprep.subr.mxu0 %v626
    %754 = vmatpush1.msra.mxu0 %v625
    %755 = vmatprep.subr.mxu0 %v628
    %756 = vmatpush1.msra.mxu0 %v627
    %757 = vmatprep.subr.mxu0 %v630
    %758 = vmatpush1.msra.mxu0 %v629
    %759 = vmatprep.subr.mxu0 %v632
    %760 = vmatpush1.msra.mxu0 %v631
    %761 = vmatprep.subr.mxu0 %v634
    %762 = vmatpush1.msra.mxu0 %v633
    %763 = vmatprep.subr.mxu0 %v636
    %764 = vmatpush1.msra.mxu0 %v635
    %765 = vmatprep.subr.mxu0 %v638
    %766 = vmatpush1.msra.mxu0 %v637
    %767 = vmatprep.subr.mxu0 %v640
    %768 = vmatpush1.msra.mxu0 %v639
    %769 = vmatprep.mubr.f32.mxu0 %v566
    %770 = vmatmul.mubr.f32.gmra.mrb[0].mxu0 %v565
    %v771 = vpop.f32.mrb[0].mxu0
    %v772 = vadd.f32 0.0, %v771
    %v773 = vpop.f32.mrb[0].mxu0
    %v774 = vadd.f32 0.0, %v773
    %775 = vdwg.mxu0
    %776 = vmatprep.subr.mxu0 %v642
    %777 = vmatpush1.msra.mxu0 %v641
    %778 = vmatprep.subr.mxu0 %v644
    %779 = vmatpush1.msra.mxu0 %v643
    %780 = vmatprep.subr.mxu0 %v646
    %781 = vmatpush1.msra.mxu0 %v645
    %782 = vmatprep.subr.mxu0 %v648
    %783 = vmatpush1.msra.mxu0 %v647
    %784 = vmatprep.subr.mxu0 %v650
    %785 = vmatpush1.msra.mxu0 %v649
    %786 = vmatprep.subr.mxu0 %v652
    %787 = vmatpush1.msra.mxu0 %v651
    %788 = vmatprep.subr.mxu0 %v654
    %789 = vmatpush1.msra.mxu0 %v653
    %790 = vmatprep.subr.mxu0 %v656
    %791 = vmatpush1.msra.mxu0 %v655
    %792 = vmatprep.subr.mxu0 %v658
    %793 = vmatpush1.msra.mxu0 %v657
    %794 = vmatprep.subr.mxu0 %v660
    %795 = vmatpush1.msra.mxu0 %v659
    %796 = vmatprep.subr.mxu0 %v662
    %797 = vmatpush1.msra.mxu0 %v661
    %798 = vmatprep.subr.mxu0 %v664
    %799 = vmatpush1.msra.mxu0 %v663
    %800 = vmatprep.subr.mxu0 %v666
    %801 = vmatpush1.msra.mxu0 %v665
    %802 = vmatprep.subr.mxu0 %v668
    %803 = vmatpush1.msra.mxu0 %v667
    %804 = vmatprep.subr.mxu0 %v670
    %805 = vmatpush1.msra.mxu0 %v669
    %806 = vmatprep.subr.mxu0 %v672
    %807 = vmatpush1.msra.mxu0 %v671
    %808 = vmatprep.subr.mxu0 %v674
    %809 = vmatpush1.msra.mxu0 %v673
    %810 = vmatprep.subr.mxu0 %v676
    %811 = vmatpush1.msra.mxu0 %v675
    %812 = vmatprep.subr.mxu0 %v678
    %813 = vmatpush1.msra.mxu0 %v677
    %814 = vmatprep.subr.mxu0 %v680
    %815 = vmatpush1.msra.mxu0 %v679
    %816 = vmatprep.subr.mxu0 %v682
    %817 = vmatpush1.msra.mxu0 %v681
    %818 = vmatprep.subr.mxu0 %v684
    %819 = vmatpush1.msra.mxu0 %v683
    %820 = vmatprep.subr.mxu0 %v686
    %821 = vmatpush1.msra.mxu0 %v685
    %822 = vmatprep.subr.mxu0 %v688
    %823 = vmatpush1.msra.mxu0 %v687
    %824 = vmatprep.subr.mxu0 %v690
    %825 = vmatpush1.msra.mxu0 %v689
    %826 = vmatprep.subr.mxu0 %v692
    %827 = vmatpush1.msra.mxu0 %v691
    %828 = vmatprep.subr.mxu0 %v694
    %829 = vmatpush1.msra.mxu0 %v693
    %830 = vmatprep.subr.mxu0 %v696
    %831 = vmatpush1.msra.mxu0 %v695
    %832 = vmatprep.subr.mxu0 %v698
    %833 = vmatpush1.msra.mxu0 %v697
    %834 = vmatprep.subr.mxu0 %v700
    %835 = vmatpush1.msra.mxu0 %v699
    %836 = vmatprep.subr.mxu0 %v702
    %837 = vmatpush1.msra.mxu0 %v701
    %838 = vmatprep.subr.mxu0 %v704
    %839 = vmatpush1.msra.mxu0 %v703
    %840 = vmatprep.mubr.f32.mxu0 %v574
    %841 = vmatmul.mubr.f32.gmra.mrb[0].mxu0 %v573
    %v842 = vpop.f32.mrb[0].mxu0
    %v843 = vadd.f32 %v772, %v842
    %v844 = vpop.f32.mrb[0].mxu0
    %v845 = vadd.f32 %v774, %v844
    %846 = vdwg.mxu0
    %v847 = vsel %vm247, %v843, 0.0
    %v848 = vsel %vm247, %v845, 0.0
    %v849 = vadd.f32 %v847, %v848
    %850 = vadd.xlane.f32.xlu0 %v849
    %v851 = vpop.xlane.xlu0 %850
    %v852 = vrot.slane %v851, 4
    %v853 = vadd.f32 %v851, %v852
    %v854 = vrot.slane %v853, 2
    %v855 = vadd.f32 %v853, %v854
    %v856 = vrot.slane %v855, 1
    %v857 = vadd.f32 %v855, %v856
    %s858 = vtos %v857
    %v859 = vrcp.pop 512.0
    %s860 = vtos %v859
    %s861 = smul.f32 %s858, %s860
    %v862 = vstv %s861
    %v863 = vsub.f32 %v843, %v862
    %v864 = vsub.f32 %v845, %v862
    %v865 = vmul.f32 %v863, %v863
    %v866 = vmul.f32 %v864, %v864
    %v867 = vsel %vm247, %v865, 0.0
    %v868 = vsel %vm247, %v866, 0.0
    %v869 = vadd.f32 %v867, %v868
    %870 = vadd.xlane.f32.xlu0 %v869
    %v871 = vpop.xlane.xlu0 %870
    %v872 = vrot.slane %v871, 4
    %v873 = vadd.f32 %v871, %v872
    %v874 = vrot.slane %v873, 2
    %v875 = vadd.f32 %v873, %v874
    %v876 = vrot.slane %v875, 1
    %v877 = vadd.f32 %v875, %v876
    %s878 = vtos %v877
    %v879 = vrcp.pop 512.0
    %s880 = vtos %v879
    %s881 = smul.f32 %s878, %s880
    %s882 = sld [smem:[#allocation8]]
    %s883 = sld [smem:[#allocation8 + $0x1]]
    %s884 = sadd.f32 %s881, 1e-05
    %v885 = vstv %s884
    %v886 = vrsqrt.pop %v885
    %s887 = vtos %v886
    %v888 = vstv %s887
    %v889 = vmul.f32 %v863, %v888
    %v890 = vmul.f32 %v864, %v888
    %v891 = vstv %s882
    %v892 = vmul.f32 %v889, %v891
    %v893 = vmul.f32 %v890, %v891
    %v894 = vstv %s883
    %v895 = vadd.f32 %v892, %v894
    %v896 = vadd.f32 %v893, %v894
    %v897 = vxor.u32 %v895, 2147483648
    %v898 = vxor.u32 %v896, 2147483648
    %v899 = vmul.f32 %v897, 1.442695
    %v900 = vpow.pop %v899
    %v901 = vmul.f32 %v898, 1.442695
    %v902 = vpow.pop %v901
    %v903 = vadd.f32 %v900, 1.0
    %v904 = vadd.f32 %v902, 1.0
    %v905 = vrcp.pop %v903
    %v906 = vmul.f32 1.0, %v905
    %v907 = vrcp.pop %v904
    %v908 = vmul.f32 1.0, %v907
    %v911 = vcombine.low %v906, %v908
    %v913 = vunpack.c.l.s4 1966171168
    %v914 = vunpack.c.0.s8 %v913
    %v915 = vlaneseq
    %v916 = vshrl.u32 %v915, 7
    %v917 = vsub.s32 %v914, %v916
    %v918 = vrot.slane %v911, %v917
    %v919 = vcombine.high %v918, %v918
    %v921 = vunpack.c.l.s4 1966171168
    %v922 = vunpack.c.0.s8 %v921
    %v923 = vlaneseq
    %v924 = vshrl.u32 %v923, 7
    %v925 = vsub.s32 %v922, %v924
    %v926 = vrot.slane %v918, %v925
    %v928 = vunpack.c.l.s4 1966171168
    %v929 = vunpack.c.0.s8 %v928
    %v930 = vlaneseq
    %v931 = vshrl.u32 %v930, 7
    %v932 = vsub.s32 %v929, %v931
    %v933 = vrot.slane %v919, %v932
    %v934 = vlaneseq
    %v935 = vshrl.u32 %v934, 7
    %v936 = vsub.s32 0, %v935
    %v937 = vrot.slane %v926, %v936
    %v938 = vlaneseq
    %v939 = vshrl.u32 %v938, 7
    %v940 = vsub.s32 1, %v939
    %v941 = vrot.slane %v926, %v940
    %v942 = vlaneseq
    %v943 = vshrl.u32 %v942, 7
    %v944 = vsub.s32 0, %v943
    %v945 = vrot.slane %v933, %v944
    %v946 = vlaneseq
    %v947 = vshrl.u32 %v946, 7
    %v948 = vsub.s32 1, %v947
    %v949 = vrot.slane %v933, %v948
    %v954 = vmul.f32 %v468, %v937
    %v955 = vmul.f32 %v469, %v941
    %v956 = vmul.f32 %v470, %v937
    %v957 = vmul.f32 %v471, %v941
    %v958 = vmul.f32 %v472, %v937
    %v959 = vmul.f32 %v473, %v941
    %v960 = vmul.f32 %v474, %v937
    %v961 = vmul.f32 %v475, %v941
    %v962 = vmul.f32 %v476, %v945
    %v963 = vmul.f32 %v477, %v949
    %v964 = vmul.f32 %v478, %v945
    %v965 = vmul.f32 %v479, %v949
    %v966 = vmul.f32 %v480, %v945
    %v967 = vmul.f32 %v481, %v949
    %v968 = vmul.f32 %v482, %v945
    %v969 = vmul.f32 %v483, %v949
    %970 = vst [vmem:[#allocation9] sm:$0xff] %v954
    %971 = vst [vmem:[#allocation9 + $0x8] sm:$0xff] %v955
    %972 = vst [vmem:[#allocation9 + $0x10] sm:$0xff] %v956
    %973 = vst [vmem:[#allocation9 + $0x18] sm:$0xff] %v957
    %974 = vst [vmem:[#allocation9 + $0x20] sm:$0xff] %v958
    %975 = vst [vmem:[#allocation9 + $0x28] sm:$0xff] %v959
    %976 = vst [vmem:[#allocation9 + $0x30] sm:$0xff] %v960
    %977 = vst [vmem:[#allocation9 + $0x38] sm:$0xff] %v961
    %978 = vst [vmem:[#allocation9 + $0x40] sm:$0xff] %v962
    %979 = vst [vmem:[#allocation9 + $0x48] sm:$0xff] %v963
    %980 = vst [vmem:[#allocation9 + $0x50] sm:$0xff] %v964
    %981 = vst [vmem:[#allocation9 + $0x58] sm:$0xff] %v965
    %982 = vst [vmem:[#allocation9 + $0x60] sm:$0xff] %v966
    %983 = vst [vmem:[#allocation9 + $0x68] sm:$0xff] %v967
    %984 = vst [vmem:[#allocation9 + $0x70] sm:$0xff] %v968
    %985 = vst [vmem:[#allocation9 + $0x78] sm:$0xff] %v969
    // Predicated region
    $region42: #{tpu_custom_call.1} parent=1 // pred_check
      _
    $region43: #{tpu_custom_call.1} parent=1 // pred_check_branch
      %987 = sbr.rel (0) target = $region45
    $region44: #{tpu_custom_call.1} parent=1 // pred_region
      %s989 = ssub.s32 2048, 2048
      %990 = vsyncadd [#allocation4], %s989
      %s991 = sshll.u32 [#allocation9], 4
      %s992 = int_to_ptr.vmem [resolvable:$true] %s991
      %997 = dma.vmem_to_hbm [thread:$0]  %s992, 2048, %s7, [#allocation4], 256, 256, 16
    $region45: #{tpu_custom_call.1} parent=1 // pred_fallthru
      _
    // Predicated region
    $region46: #{tpu_custom_call.1} parent=1 // pred_check
      _
    $region47: #{tpu_custom_call.1} parent=1 // pred_check_branch
      %999 = sbr.rel (0) target = $region49
    $region48: #{tpu_custom_call.1} parent=1 // pred_region
      %1000 = dma.done [#allocation4], 2048
    $region49: #{tpu_custom_call.1} parent=1 // pred_fallthru
      _
    %1001 = vsyncpa [#allocation3], 1
    %1002 = vsyncpa [#allocation7], 1
    %1003 = vsyncpa [#allocation4], 1
    %1004 = vsyncpa [#allocation5], 1

</llo_original>
